<compile_context>
chip_gen: v5e
topology: v5e:2x2
jax: 0.10.0
libtpu: 0.0.40
codegen_flags: <defaults>
</compile_context>

<pallas_src>
import math

import jax
import jax.numpy as jnp
from jax import lax
from jax.experimental import pallas as pl
from jax.experimental.pallas import tpu as pltpu

# ---------------- model hyperparameters (small, consistent with the module) ----------------
B = 2            # batch
S = 8            # sequence length
E = 32           # embed_dim
H = 4            # num_heads
DH = E // H      # head dim
FF = 64          # dim_feedforward
LN_EPS = 1e-5

WBLOB_COLS = 3 * E                      # widest packed matrix (W_qkv) defines blob width
WBLOB_ROWS = E + E + E + FF             # W_qkv | W_o | W1^T | W2^T stacked along sublanes
PBLOB_ROWS = 8                          # b_qkv, b_o, b1, b2, g0, be0, g1, be1


def transformer_block_kernel(x_ref, wb_ref, pb_ref, o_ref):
    """One batch element per grid step: x_ref (S, E), wb_ref (160, 96), pb_ref (8, 96)."""
    x = x_ref[...].astype(jnp.float32)                               # (S, E)

    wb = wb_ref[...]
    pb = pb_ref[...]
    w_qkv = wb[:E, :]                                                # (E, 3E), scale folded into q part
    w_o = wb[E:2 * E, :E]                                            # (E, E)  == out_proj_w.T
    w_1 = wb[2 * E:3 * E, :FF]                                       # (E, FF)
    w_2 = wb[3 * E:3 * E + FF, :E]                                   # (FF, E)
    b_qkv = pb[0:1, :]                                               # (1, 3E)
    b_o = pb[1:2, :E]
    b_1 = pb[2:3, :FF]
    b_2 = pb[3:4, :E]
    g0, be0 = pb[4:5, :E], pb[5:6, :E]
    g1, be1 = pb[6:7, :E], pb[7:8, :E]

    # ----- fused QKV projection: one MXU op for all heads -----
    qkv = jnp.dot(x, w_qkv, preferred_element_type=jnp.float32) + b_qkv   # (S, 3E)

    # ----- per-head attention (static lane slices of qkv; softmax per head) -----
    # TODO(synk): attention-weight dropout skipped (eval / inference semantics).
    ctx_parts = []
    for h in range(H):                                               # static unroll, H = 4
        q = qkv[:, h * DH:(h + 1) * DH]                              # (S, DH)  scale pre-folded
        k = qkv[:, E + h * DH:E + (h + 1) * DH]
        v = qkv[:, 2 * E + h * DH:2 * E + (h + 1) * DH]
        s = lax.dot_general(q, k, (((1,), (1,)), ((), ())),
                            preferred_element_type=jnp.float32)      # (S, S)
        s = s - jnp.max(s, axis=-1, keepdims=True)
        p = jnp.exp(s)
        p = p / jnp.sum(p, axis=-1, keepdims=True)                   # exact divide for f32 parity
        ctx_parts.append(jnp.dot(p, v, preferred_element_type=jnp.float32))  # (S, DH)
    ctx = jnp.concatenate(ctx_parts, axis=-1)                        # (S, E) heads in order

    # ----- fused output projection -----
    attn = jnp.dot(ctx, w_o, preferred_element_type=jnp.float32) + b_o      # (S, E)

    # ----- residual + layernorm0 (dropout(y) == y in eval) -----
    z = x + attn
    mu = jnp.mean(z, axis=-1, keepdims=True)
    var = jnp.mean((z - mu) * (z - mu), axis=-1, keepdims=True)
    z = (z - mu) * lax.rsqrt(var + LN_EPS)
    z = z * g0 + be0                                                 # (S, E)

    # ----- MLP: Linear -> ReLU -> (Dropout) -> Linear -----
    hid = jnp.dot(z, w_1, preferred_element_type=jnp.float32) + b_1  # (S, FF)
    hid = jnp.maximum(hid, 0.0)
    y2 = jnp.dot(hid, w_2, preferred_element_type=jnp.float32) + b_2  # (S, E)

    # ----- residual + layernorm1 -----
    z2 = z + y2
    mu2 = jnp.mean(z2, axis=-1, keepdims=True)
    var2 = jnp.mean((z2 - mu2) * (z2 - mu2), axis=-1, keepdims=True)
    z2 = (z2 - mu2) * lax.rsqrt(var2 + LN_EPS)
    z2 = z2 * g1 + be1                                               # (S, E)

    o_ref[...] = z2.astype(o_ref.dtype)


def transformer_block(x, kp):
    """x: (B, S, E) float32. kp: {'wb': (160, 96), 'pb': (8, 96)} packed kernel params."""
    x2 = x.reshape(B * S, E)                     # free wrapper-side flatten of (B, S)

    in_specs = [
        pl.BlockSpec((S, E), lambda b: (b, 0)),                  # per-batch token block
        pl.BlockSpec((WBLOB_ROWS, WBLOB_COLS), lambda b: (0, 0)),  # weights blob (resident)
        pl.BlockSpec((PBLOB_ROWS, WBLOB_COLS), lambda b: (0, 0)),  # biases/LN blob (resident)
    ]
    out_specs = pl.BlockSpec((S, E), lambda b: (b, 0))

    out = pl.pallas_call(
        transformer_block_kernel,
        out_shape=jax.ShapeDtypeStruct((B * S, E), x.dtype),
        grid_spec=pltpu.PrefetchScalarGridSpec(
            num_scalar_prefetch=0,
            grid=(B,),                            # one batch element per step
            in_specs=in_specs,
            out_specs=out_specs,
        ),
        compiler_params=pltpu.CompilerParams(
            dimension_semantics=("parallel",),    # batch steps are independent (2 TCs on v7x)
        ),
    )(x2, kp["wb"], kp["pb"])
    return out.reshape(B, S, E)


def make_params(key):
    """PyTorch-layout parameters (as nn.MultiheadAttention / nn.Linear store them)."""
    ks = jax.random.split(key, 8)
    p = {}
    p["in_proj_w"] = 0.05 * jax.random.normal(ks[0], (3 * E, E), jnp.float32)   # (3E, E)
    p["in_proj_b"] = 0.01 * jax.random.normal(ks[1], (3 * E,), jnp.float32)
    p["out_proj_w"] = 0.05 * jax.random.normal(ks[2], (E, E), jnp.float32)      # (E, E)
    p["out_proj_b"] = 0.01 * jax.random.normal(ks[3], (E,), jnp.float32)
    p["w1"] = 0.05 * jax.random.normal(ks[4], (FF, E), jnp.float32)             # (FF, E)
    p["b1"] = 0.01 * jax.random.normal(ks[5], (FF,), jnp.float32)
    p["w2"] = 0.05 * jax.random.normal(ks[6], (E, FF), jnp.float32)             # (E, FF)
    p["b2"] = 0.01 * jax.random.normal(ks[7], (E,), jnp.float32)
    p["g0"] = jnp.ones((E,), jnp.float32)        # LayerNorm init: weight=1, bias=0
    p["be0"] = jnp.zeros((E,), jnp.float32)
    p["g1"] = jnp.ones((E,), jnp.float32)
    p["be1"] = jnp.zeros((E,), jnp.float32)
    return p


def prepare_kernel_params(p):
    """Free wrapper-side re-layout: fuse QKV, transpose for x @ W, fold 1/sqrt(DH), pack blobs."""
    scale = 1.0 / math.sqrt(DH)
    wq = p["in_proj_w"][0 * E:1 * E]             # (E, E), rows are output features
    wk = p["in_proj_w"][1 * E:2 * E]
    wv = p["in_proj_w"][2 * E:3 * E]
    bq = p["in_proj_b"][0 * E:1 * E]
    bk = p["in_proj_b"][1 * E:2 * E]
    bv = p["in_proj_b"][2 * E:3 * E]

    w_qkv = jnp.concatenate([wq.T * scale, wk.T, wv.T], axis=1)      # (E, 3E), scale folded into q
    b_qkv = jnp.concatenate([bq * scale, bk, bv])                    # (3E,)
    w_o = p["out_proj_w"].T                                          # (E, E): ctx @ out_proj_w.T
    w1t = p["w1"].T                                                  # (E, FF)
    w2t = p["w2"].T                                                  # (FF, E)

    def pad_cols(a):
        return jnp.pad(a, ((0, 0), (0, WBLOB_COLS - a.shape[1])))

    wb = jnp.concatenate([pad_cols(w_qkv), pad_cols(w_o),
                          pad_cols(w1t), pad_cols(w2t)], axis=0)     # (160, 96)

    def row(v):
        return jnp.pad(v.reshape(1, -1), ((0, 0), (0, WBLOB_COLS - v.shape[0])))

    pb = jnp.concatenate([row(b_qkv), row(p["out_proj_b"]), row(p["b1"]), row(p["b2"]),
                          row(p["g0"]), row(p["be0"]), row(p["g1"]), row(p["be1"])],
                         axis=0)                                     # (8, 96)
    return {"wb": wb, "pb": pb}


def reference_block(x, p):
    """Pure-JAX reference with the PyTorch module's math (eval mode) for a sanity check."""
    def ln(z, g, b):
        mu = jnp.mean(z, -1, keepdims=True)
        var = jnp.mean((z - mu) ** 2, -1, keepdims=True)
        return (z - mu) / jnp.sqrt(var + LN_EPS) * g + b

    qkv = x @ p["in_proj_w"].T + p["in_proj_b"]            # (B, S, 3E)
    q, k, v = qkv[..., :E], qkv[..., E:2 * E], qkv[..., 2 * E:]

    def split(t):                                          # (B, S, E) -> (B, H, S, DH)
        return t.reshape(B, S, H, DH).transpose(0, 2, 1, 3)

    qh, kh, vh = split(q), split(k), split(v)
    s = jnp.einsum("bhqd,bhkd->bhqk", qh, kh) / math.sqrt(DH)
    probs = jax.nn.softmax(s, axis=-1)
    o = jnp.einsum("bhqk,bhkd->bhqd", probs, vh).transpose(0, 2, 1, 3).reshape(B, S, E)
    o = o @ p["out_proj_w"].T + p["out_proj_b"]
    z = ln(x + o, p["g0"], p["be0"])
    h = jnp.maximum(z @ p["w1"].T + p["b1"], 0.0)
    y2 = h @ p["w2"].T + p["b2"]
    return ln(z + y2, p["g1"], p["be1"])


if __name__ == "__main__":
    key = jax.random.PRNGKey(0)
    kx, kparam = jax.random.split(key)
    x = jax.random.normal(kx, (B, S, E), jnp.float32)
    params = make_params(kparam)
    kernel_params = prepare_kernel_params(params)

    out = transformer_block(x, kernel_params)
    out = jax.block_until_ready(out)

    ref = reference_block(x, params)
    assert out.shape == (B, S, E)
    max_err = float(jnp.max(jnp.abs(out - ref)))
    # tolerance covers f32-on-MXU pass differences between the fused kernel and the XLA reference
    assert jnp.allclose(out, ref, rtol=2e-3, atol=2e-3), max_err

    print("KERNEL_OK")
</pallas_src>

<mosaic_0001>
module attributes {stable_mosaic.version = 11 : i64} {
  func.func @transformer_block_kernel(%arg0: i32, %arg1: memref<8x32xf32, #tpu.memory_space<vmem>>, %arg2: memref<160x96xf32, #tpu.memory_space<vmem>>, %arg3: memref<8x96xf32, #tpu.memory_space<vmem>>, %arg4: memref<8x32xf32, #tpu.memory_space<vmem>>) attributes {dimension_semantics = [#tpu.dimension_semantics<parallel>], iteration_bounds = array<i64: 2>, scalar_prefetch = 0 : i64, scratch_operands = 0 : i64, tpu.core_type = #tpu.core_type<tc>, window_params = [{transform_indices = @transform_0, window_bounds = array<i64: 8, 32>}, {pipeline_mode = #tpu.pipeline_mode<synchronous>, transform_indices = @transform_1, window_bounds = array<i64: 160, 96>}, {pipeline_mode = #tpu.pipeline_mode<synchronous>, transform_indices = @transform_2, window_bounds = array<i64: 8, 96>}, {transform_indices = @transform_3, window_bounds = array<i64: 8, 32>}]} {
    %c0 = arith.constant 0 : index
    %c0_0 = arith.constant 0 : index
    %0 = vector.load %arg1[%c0, %c0_0] : memref<8x32xf32, #tpu.memory_space<vmem>>, vector<8x32xf32>
    %c0_1 = arith.constant 0 : index
    %c0_2 = arith.constant 0 : index
    %1 = vector.load %arg2[%c0_1, %c0_2] : memref<160x96xf32, #tpu.memory_space<vmem>>, vector<160x96xf32>
    %c0_3 = arith.constant 0 : index
    %c0_4 = arith.constant 0 : index
    %2 = vector.load %arg3[%c0_3, %c0_4] : memref<8x96xf32, #tpu.memory_space<vmem>>, vector<8x96xf32>
    %3 = vector.extract_strided_slice %1 {offsets = [0, 0], sizes = [32, 96], strides = [1, 1]} : vector<160x96xf32> to vector<32x96xf32>
    %4 = vector.extract_strided_slice %1 {offsets = [32, 0], sizes = [32, 32], strides = [1, 1]} : vector<160x96xf32> to vector<32x32xf32>
    %5 = vector.extract_strided_slice %1 {offsets = [64, 0], sizes = [32, 64], strides = [1, 1]} : vector<160x96xf32> to vector<32x64xf32>
    %6 = vector.extract_strided_slice %1 {offsets = [96, 0], sizes = [64, 32], strides = [1, 1]} : vector<160x96xf32> to vector<64x32xf32>
    %7 = vector.extract_strided_slice %2 {offsets = [0, 0], sizes = [1, 96], strides = [1, 1]} : vector<8x96xf32> to vector<1x96xf32>
    %8 = vector.extract_strided_slice %2 {offsets = [1, 0], sizes = [1, 32], strides = [1, 1]} : vector<8x96xf32> to vector<1x32xf32>
    %9 = vector.extract_strided_slice %2 {offsets = [2, 0], sizes = [1, 64], strides = [1, 1]} : vector<8x96xf32> to vector<1x64xf32>
    %10 = vector.extract_strided_slice %2 {offsets = [3, 0], sizes = [1, 32], strides = [1, 1]} : vector<8x96xf32> to vector<1x32xf32>
    %11 = vector.extract_strided_slice %2 {offsets = [4, 0], sizes = [1, 32], strides = [1, 1]} : vector<8x96xf32> to vector<1x32xf32>
    %12 = vector.extract_strided_slice %2 {offsets = [5, 0], sizes = [1, 32], strides = [1, 1]} : vector<8x96xf32> to vector<1x32xf32>
    %13 = vector.extract_strided_slice %2 {offsets = [6, 0], sizes = [1, 32], strides = [1, 1]} : vector<8x96xf32> to vector<1x32xf32>
    %14 = vector.extract_strided_slice %2 {offsets = [7, 0], sizes = [1, 32], strides = [1, 1]} : vector<8x96xf32> to vector<1x32xf32>
    %cst = arith.constant dense<0.000000e+00> : vector<8x96xf32>
    %15 = tpu.matmul %0, %3, %cst {dimension_numbers = #tpu.dot_dimension_numbers<[1], [0], [0], [1], [0, 0, 1, 1], [], []>} : vector<8x32xf32>, vector<32x96xf32>, vector<8x96xf32> -> vector<8x96xf32>
    %16 = vector.broadcast %7 : vector<1x96xf32> to vector<8x96xf32>
    %17 = arith.addf %15, %16 : vector<8x96xf32>
    %18 = vector.extract_strided_slice %17 {offsets = [0, 0], sizes = [8, 8], strides = [1, 1]} : vector<8x96xf32> to vector<8x8xf32>
    %19 = vector.extract_strided_slice %17 {offsets = [0, 32], sizes = [8, 8], strides = [1, 1]} : vector<8x96xf32> to vector<8x8xf32>
    %20 = vector.extract_strided_slice %17 {offsets = [0, 64], sizes = [8, 8], strides = [1, 1]} : vector<8x96xf32> to vector<8x8xf32>
    %cst_5 = arith.constant dense<0.000000e+00> : vector<8x8xf32>
    %21 = tpu.matmul %18, %19, %cst_5 {dimension_numbers = #tpu.dot_dimension_numbers<[1], [1], [0], [0], [0, 0, 1, 0], [], []>} : vector<8x8xf32>, vector<8x8xf32>, vector<8x8xf32> -> vector<8x8xf32>
    %cst_6 = arith.constant dense<0xFF800000> : vector<8xf32>
    %22 = vector.multi_reduction <maximumf>, %21, %cst_6 [1] : vector<8x8xf32> to vector<8xf32>
    %23 = vector.shape_cast %22 : vector<8xf32> to vector<8x1xf32>
    %24 = vector.broadcast %23 : vector<8x1xf32> to vector<8x8xf32>
    %25 = arith.subf %21, %24 : vector<8x8xf32>
    %26 = math.exp %25 : vector<8x8xf32>
    %cst_7 = arith.constant dense<0.000000e+00> : vector<8xf32>
    %27 = vector.multi_reduction <add>, %26, %cst_7 [1] : vector<8x8xf32> to vector<8xf32>
    %28 = vector.shape_cast %27 : vector<8xf32> to vector<8x1xf32>
    %29 = vector.broadcast %28 : vector<8x1xf32> to vector<8x8xf32>
    %30 = arith.divf %26, %29 : vector<8x8xf32>
    %cst_8 = arith.constant dense<0.000000e+00> : vector<8x8xf32>
    %31 = tpu.matmul %30, %20, %cst_8 {dimension_numbers = #tpu.dot_dimension_numbers<[1], [0], [0], [1], [0, 0, 1, 1], [], []>} : vector<8x8xf32>, vector<8x8xf32>, vector<8x8xf32> -> vector<8x8xf32>
    %32 = vector.extract_strided_slice %17 {offsets = [0, 8], sizes = [8, 8], strides = [1, 1]} : vector<8x96xf32> to vector<8x8xf32>
    %33 = vector.extract_strided_slice %17 {offsets = [0, 40], sizes = [8, 8], strides = [1, 1]} : vector<8x96xf32> to vector<8x8xf32>
    %34 = vector.extract_strided_slice %17 {offsets = [0, 72], sizes = [8, 8], strides = [1, 1]} : vector<8x96xf32> to vector<8x8xf32>
    %cst_9 = arith.constant dense<0.000000e+00> : vector<8x8xf32>
    %35 = tpu.matmul %32, %33, %cst_9 {dimension_numbers = #tpu.dot_dimension_numbers<[1], [1], [0], [0], [0, 0, 1, 0], [], []>} : vector<8x8xf32>, vector<8x8xf32>, vector<8x8xf32> -> vector<8x8xf32>
    %cst_10 = arith.constant dense<0xFF800000> : vector<8xf32>
    %36 = vector.multi_reduction <maximumf>, %35, %cst_10 [1] : vector<8x8xf32> to vector<8xf32>
    %37 = vector.shape_cast %36 : vector<8xf32> to vector<8x1xf32>
    %38 = vector.broadcast %37 : vector<8x1xf32> to vector<8x8xf32>
    %39 = arith.subf %35, %38 : vector<8x8xf32>
    %40 = math.exp %39 : vector<8x8xf32>
    %cst_11 = arith.constant dense<0.000000e+00> : vector<8xf32>
    %41 = vector.multi_reduction <add>, %40, %cst_11 [1] : vector<8x8xf32> to vector<8xf32>
    %42 = vector.shape_cast %41 : vector<8xf32> to vector<8x1xf32>
    %43 = vector.broadcast %42 : vector<8x1xf32> to vector<8x8xf32>
    %44 = arith.divf %40, %43 : vector<8x8xf32>
    %cst_12 = arith.constant dense<0.000000e+00> : vector<8x8xf32>
    %45 = tpu.matmul %44, %34, %cst_12 {dimension_numbers = #tpu.dot_dimension_numbers<[1], [0], [0], [1], [0, 0, 1, 1], [], []>} : vector<8x8xf32>, vector<8x8xf32>, vector<8x8xf32> -> vector<8x8xf32>
    %46 = vector.extract_strided_slice %17 {offsets = [0, 16], sizes = [8, 8], strides = [1, 1]} : vector<8x96xf32> to vector<8x8xf32>
    %47 = vector.extract_strided_slice %17 {offsets = [0, 48], sizes = [8, 8], strides = [1, 1]} : vector<8x96xf32> to vector<8x8xf32>
    %48 = vector.extract_strided_slice %17 {offsets = [0, 80], sizes = [8, 8], strides = [1, 1]} : vector<8x96xf32> to vector<8x8xf32>
    %cst_13 = arith.constant dense<0.000000e+00> : vector<8x8xf32>
    %49 = tpu.matmul %46, %47, %cst_13 {dimension_numbers = #tpu.dot_dimension_numbers<[1], [1], [0], [0], [0, 0, 1, 0], [], []>} : vector<8x8xf32>, vector<8x8xf32>, vector<8x8xf32> -> vector<8x8xf32>
    %cst_14 = arith.constant dense<0xFF800000> : vector<8xf32>
    %50 = vector.multi_reduction <maximumf>, %49, %cst_14 [1] : vector<8x8xf32> to vector<8xf32>
    %51 = vector.shape_cast %50 : vector<8xf32> to vector<8x1xf32>
    %52 = vector.broadcast %51 : vector<8x1xf32> to vector<8x8xf32>
    %53 = arith.subf %49, %52 : vector<8x8xf32>
    %54 = math.exp %53 : vector<8x8xf32>
    %cst_15 = arith.constant dense<0.000000e+00> : vector<8xf32>
    %55 = vector.multi_reduction <add>, %54, %cst_15 [1] : vector<8x8xf32> to vector<8xf32>
    %56 = vector.shape_cast %55 : vector<8xf32> to vector<8x1xf32>
    %57 = vector.broadcast %56 : vector<8x1xf32> to vector<8x8xf32>
    %58 = arith.divf %54, %57 : vector<8x8xf32>
    %cst_16 = arith.constant dense<0.000000e+00> : vector<8x8xf32>
    %59 = tpu.matmul %58, %48, %cst_16 {dimension_numbers = #tpu.dot_dimension_numbers<[1], [0], [0], [1], [0, 0, 1, 1], [], []>} : vector<8x8xf32>, vector<8x8xf32>, vector<8x8xf32> -> vector<8x8xf32>
    %60 = vector.extract_strided_slice %17 {offsets = [0, 24], sizes = [8, 8], strides = [1, 1]} : vector<8x96xf32> to vector<8x8xf32>
    %61 = vector.extract_strided_slice %17 {offsets = [0, 56], sizes = [8, 8], strides = [1, 1]} : vector<8x96xf32> to vector<8x8xf32>
    %62 = vector.extract_strided_slice %17 {offsets = [0, 88], sizes = [8, 8], strides = [1, 1]} : vector<8x96xf32> to vector<8x8xf32>
    %cst_17 = arith.constant dense<0.000000e+00> : vector<8x8xf32>
    %63 = tpu.matmul %60, %61, %cst_17 {dimension_numbers = #tpu.dot_dimension_numbers<[1], [1], [0], [0], [0, 0, 1, 0], [], []>} : vector<8x8xf32>, vector<8x8xf32>, vector<8x8xf32> -> vector<8x8xf32>
    %cst_18 = arith.constant dense<0xFF800000> : vector<8xf32>
    %64 = vector.multi_reduction <maximumf>, %63, %cst_18 [1] : vector<8x8xf32> to vector<8xf32>
    %65 = vector.shape_cast %64 : vector<8xf32> to vector<8x1xf32>
    %66 = vector.broadcast %65 : vector<8x1xf32> to vector<8x8xf32>
    %67 = arith.subf %63, %66 : vector<8x8xf32>
    %68 = math.exp %67 : vector<8x8xf32>
    %cst_19 = arith.constant dense<0.000000e+00> : vector<8xf32>
    %69 = vector.multi_reduction <add>, %68, %cst_19 [1] : vector<8x8xf32> to vector<8xf32>
    %70 = vector.shape_cast %69 : vector<8xf32> to vector<8x1xf32>
    %71 = vector.broadcast %70 : vector<8x1xf32> to vector<8x8xf32>
    %72 = arith.divf %68, %71 : vector<8x8xf32>
    %cst_20 = arith.constant dense<0.000000e+00> : vector<8x8xf32>
    %73 = tpu.matmul %72, %62, %cst_20 {dimension_numbers = #tpu.dot_dimension_numbers<[1], [0], [0], [1], [0, 0, 1, 1], [], []>} : vector<8x8xf32>, vector<8x8xf32>, vector<8x8xf32> -> vector<8x8xf32>
    %74 = tpu.concatenate %31, %45, %59, %73 in 1 : vector<8x8xf32>, vector<8x8xf32>, vector<8x8xf32>, vector<8x8xf32> -> vector<8x32xf32>
    %cst_21 = arith.constant dense<0.000000e+00> : vector<8x32xf32>
    %75 = tpu.matmul %74, %4, %cst_21 {dimension_numbers = #tpu.dot_dimension_numbers<[1], [0], [0], [1], [0, 0, 1, 1], [], []>} : vector<8x32xf32>, vector<32x32xf32>, vector<8x32xf32> -> vector<8x32xf32>
    %76 = vector.broadcast %8 : vector<1x32xf32> to vector<8x32xf32>
    %77 = arith.addf %75, %76 : vector<8x32xf32>
    %78 = arith.addf %0, %77 : vector<8x32xf32>
    %cst_22 = arith.constant dense<0.000000e+00> : vector<8xf32>
    %79 = vector.multi_reduction <add>, %78, %cst_22 [1] : vector<8x32xf32> to vector<8xf32>
    %80 = vector.shape_cast %79 : vector<8xf32> to vector<8x1xf32>
    %cst_23 = arith.constant 3.200000e+01 : f32
    %81 = vector.broadcast %cst_23 : f32 to vector<8x1xf32>
    %82 = arith.divf %80, %81 : vector<8x1xf32>
    %83 = vector.broadcast %82 : vector<8x1xf32> to vector<8x32xf32>
    %84 = arith.subf %78, %83 : vector<8x32xf32>
    %85 = vector.broadcast %82 : vector<8x1xf32> to vector<8x32xf32>
    %86 = arith.subf %78, %85 : vector<8x32xf32>
    %87 = arith.mulf %84, %86 : vector<8x32xf32>
    %cst_24 = arith.constant dense<0.000000e+00> : vector<8xf32>
    %88 = vector.multi_reduction <add>, %87, %cst_24 [1] : vector<8x32xf32> to vector<8xf32>
    %89 = vector.shape_cast %88 : vector<8xf32> to vector<8x1xf32>
    %cst_25 = arith.constant 3.200000e+01 : f32
    %90 = vector.broadcast %cst_25 : f32 to vector<8x1xf32>
    %91 = arith.divf %89, %90 : vector<8x1xf32>
    %92 = vector.broadcast %82 : vector<8x1xf32> to vector<8x32xf32>
    %93 = arith.subf %78, %92 : vector<8x32xf32>
    %cst_26 = arith.constant 9.99999974E-6 : f32
    %94 = vector.broadcast %cst_26 : f32 to vector<8x1xf32>
    %95 = arith.addf %91, %94 : vector<8x1xf32>
    %96 = math.rsqrt %95 : vector<8x1xf32>
    %97 = vector.broadcast %96 : vector<8x1xf32> to vector<8x32xf32>
    %98 = arith.mulf %93, %97 : vector<8x32xf32>
    %99 = vector.broadcast %11 : vector<1x32xf32> to vector<8x32xf32>
    %100 = arith.mulf %98, %99 : vector<8x32xf32>
    %101 = vector.broadcast %12 : vector<1x32xf32> to vector<8x32xf32>
    %102 = arith.addf %100, %101 : vector<8x32xf32>
    %cst_27 = arith.constant dense<0.000000e+00> : vector<8x64xf32>
    %103 = tpu.matmul %102, %5, %cst_27 {dimension_numbers = #tpu.dot_dimension_numbers<[1], [0], [0], [1], [0, 0, 1, 1], [], []>} : vector<8x32xf32>, vector<32x64xf32>, vector<8x64xf32> -> vector<8x64xf32>
    %104 = vector.broadcast %9 : vector<1x64xf32> to vector<8x64xf32>
    %105 = arith.addf %103, %104 : vector<8x64xf32>
    %cst_28 = arith.constant 0.000000e+00 : f32
    %106 = vector.broadcast %cst_28 : f32 to vector<8x64xf32>
    %107 = arith.maximumf %105, %106 : vector<8x64xf32>
    %cst_29 = arith.constant dense<0.000000e+00> : vector<8x32xf32>
    %108 = tpu.matmul %107, %6, %cst_29 {dimension_numbers = #tpu.dot_dimension_numbers<[1], [0], [0], [1], [0, 0, 1, 1], [], []>} : vector<8x64xf32>, vector<64x32xf32>, vector<8x32xf32> -> vector<8x32xf32>
    %109 = vector.broadcast %10 : vector<1x32xf32> to vector<8x32xf32>
    %110 = arith.addf %108, %109 : vector<8x32xf32>
    %111 = arith.addf %102, %110 : vector<8x32xf32>
    %cst_30 = arith.constant dense<0.000000e+00> : vector<8xf32>
    %112 = vector.multi_reduction <add>, %111, %cst_30 [1] : vector<8x32xf32> to vector<8xf32>
    %113 = vector.shape_cast %112 : vector<8xf32> to vector<8x1xf32>
    %cst_31 = arith.constant 3.200000e+01 : f32
    %114 = vector.broadcast %cst_31 : f32 to vector<8x1xf32>
    %115 = arith.divf %113, %114 : vector<8x1xf32>
    %116 = vector.broadcast %115 : vector<8x1xf32> to vector<8x32xf32>
    %117 = arith.subf %111, %116 : vector<8x32xf32>
    %118 = vector.broadcast %115 : vector<8x1xf32> to vector<8x32xf32>
    %119 = arith.subf %111, %118 : vector<8x32xf32>
    %120 = arith.mulf %117, %119 : vector<8x32xf32>
    %cst_32 = arith.constant dense<0.000000e+00> : vector<8xf32>
    %121 = vector.multi_reduction <add>, %120, %cst_32 [1] : vector<8x32xf32> to vector<8xf32>
    %122 = vector.shape_cast %121 : vector<8xf32> to vector<8x1xf32>
    %cst_33 = arith.constant 3.200000e+01 : f32
    %123 = vector.broadcast %cst_33 : f32 to vector<8x1xf32>
    %124 = arith.divf %122, %123 : vector<8x1xf32>
    %125 = vector.broadcast %115 : vector<8x1xf32> to vector<8x32xf32>
    %126 = arith.subf %111, %125 : vector<8x32xf32>
    %cst_34 = arith.constant 9.99999974E-6 : f32
    %127 = vector.broadcast %cst_34 : f32 to vector<8x1xf32>
    %128 = arith.addf %124, %127 : vector<8x1xf32>
    %129 = math.rsqrt %128 : vector<8x1xf32>
    %130 = vector.broadcast %129 : vector<8x1xf32> to vector<8x32xf32>
    %131 = arith.mulf %126, %130 : vector<8x32xf32>
    %132 = vector.broadcast %13 : vector<1x32xf32> to vector<8x32xf32>
    %133 = arith.mulf %131, %132 : vector<8x32xf32>
    %134 = vector.broadcast %14 : vector<1x32xf32> to vector<8x32xf32>
    %135 = arith.addf %133, %134 : vector<8x32xf32>
    %c0_35 = arith.constant 0 : index
    %c0_36 = arith.constant 0 : index
    %136 = vector.load %arg4[%c0_35, %c0_36] : memref<8x32xf32, #tpu.memory_space<vmem>>, vector<8x32xf32>
    tpu.vector_store %arg4[%c0_35, %c0_36], %135 {strides = array<i32>} : memref<8x32xf32, #tpu.memory_space<vmem>>, vector<8x32xf32>,
    return
  }
  func.func @transform_0(%arg0: i32) -> (i32, i32) {
    %c0_i32 = arith.constant 0 : i32
    %c0_i32_0 = arith.constant 0 : i32
    return %arg0, %c0_i32 : i32, i32
  }
  func.func @transform_1(%arg0: i32) -> (i32, i32) {
    %c0_i32 = arith.constant 0 : i32
    %c0_i32_0 = arith.constant 0 : i32
    %c0_i32_1 = arith.constant 0 : i32
    return %c0_i32, %c0_i32_0 : i32, i32
  }
  func.func @transform_2(%arg0: i32) -> (i32, i32) {
    %c0_i32 = arith.constant 0 : i32
    %c0_i32_0 = arith.constant 0 : i32
    %c0_i32_1 = arith.constant 0 : i32
    return %c0_i32, %c0_i32_0 : i32, i32
  }
  func.func @transform_3(%arg0: i32) -> (i32, i32) {
    %c0_i32 = arith.constant 0 : i32
    %c0_i32_0 = arith.constant 0 : i32
    return %arg0, %c0_i32 : i32, i32
  }
}

</mosaic_0001>

<llo_original>
// kernel: tpu_custom_call.1
$region0: #{tpu_custom_call.1}
  #allocation0 [shape = 'u32[]', space=smem, size = 0x4, offset = 0x4, fixed_abs, tag = 'smem constant byte address 0x4 - core index']
  #allocation1 [shape = 'u32[72,128]{1,0:T(1,128)}', space=vmem, size = 0x9000, scoped, tag = 'internal scratch']
  %s0 = inlined_call_operand.hbm [shape: f32[16,32], index: 0, kind: input, shape index: {}]
  %s1 = inlined_call_operand.hbm [shape: f32[160,96], index: 1, kind: input, shape index: {}]
  %s2 = inlined_call_operand.hbm [shape: f32[8,96], index: 2, kind: input, shape index: {}]
  %s3 = inlined_call_operand.hbm [shape: f32[16,32], index: 3, kind: output, shape index: {}]
  %s4 = sld [smem:[#allocation0]]
  $region57: #{tpu_custom_call.1} parent=0
    _
  %s6 = ssub.s32 1, %s4
  %s7 = scalar_select 0, %s6, %s4
  $region1: #{tpu_custom_call.1} parent=0
    #allocation2 [shape = 'u8[8192]{0}', space=vmem, size = 0x2000, scoped, tag = 'input window, operand 0']
    #allocation3 [shape = 's32[2]{0}', space=sflag, size = 0x8, scoped, tag = 'scoped memory for tpu_custom_call.1']
    #allocation4 [shape = 's32[2]{0}', space=sflag, size = 0x8, scoped, tag = 'scoped memory for tpu_custom_call.1']
    #allocation5 [shape = 'u8[81920]{0}', space=vmem, size = 0x14000, scoped, tag = 'input window, operand 1, single buffered']
    #allocation6 [shape = 's32[1]{0}', space=sflag, size = 0x4, scoped, tag = 'scoped memory for tpu_custom_call.1']
    #allocation7 [shape = 'u8[4096]{0}', space=vmem, size = 0x1000, scoped, tag = 'input window, operand 2, single buffered']
    #allocation8 [shape = 'u8[8192]{0}', space=vmem, size = 0x2000, scoped, tag = 'output window, operand 0']
    %8 = vsyncpa [#allocation3], 0
    %s9 = scalar_lea.sflag [#allocation3], 1
    %10 = vsyncpa %s9, 0
    %11 = vsyncpa [#allocation6], 0
    %12 = vsyncpa [#allocation4], 0
    %s13 = scalar_lea.sflag [#allocation4], 1
    %14 = vsyncpa %s13, 0
    loop: start=0, step=1, limit=4
    $region2: #{tpu_custom_call.1} parent=1 // loop_pre_header
      _
    $region3: #{tpu_custom_call.1} parent=1 // loop_header
      %s16 = sphi 0, %s20
      %p17 = scmp.ge.s32.totalorder %s16, 4
      %s26 = sphi 0, %s28
      %s29 = sphi 0, %s26
      %s30 = sphi 0, %s29
      %s46 = sphi 0, %s30
      %s50 = sphi 0, %s50
      %s52 = sphi 0, %s50
      %s53 = sphi 0, %s52
      %s67 = sphi 0, %s53
      %s71 = sphi 0, %s71
      %s73 = sphi 0, %s71
      %s74 = sphi 0, %s73
      %s88 = sphi 0, %s74
      %s94 = sphi 0, %s96
      %s97 = sphi 0, %s94
      %s98 = sphi 0, %s97
      %s114 = sphi 0, %s98
    $region4: #{tpu_custom_call.1} parent=1 // loop_header_branch
      %19 = sbr.rel (%p17) target = $region8
    $region5: #{tpu_custom_call.1} parent=1 // loop_body
      %s21 = ssub.s32 %s16, 1
      %s22 = ssub.s32 %s16, 2
      %s23 = sadd.s32 %s16, 1
      %s24 = ssub.s32 %s16, %s23
      %p25 = scmp.eq.s32.totalorder %s24, 0
      %s27 = sadd.s32 %s26, 1
      %s28 = scalar_select %p25, %s26, %s27
      %p31 = pneg %p25
      %p32 = scmp.eq.s32.totalorder %s16, 1
      %p33 = por %p31, %p32
      %p34 = scmp.ne.s32.totalorder %s26, %s29
      %p35 = scmp.eq.s32.totalorder %s16, 0
      %p36 = por %p34, %p35
      %p37 = scmp.ne.s32.totalorder %s26, %s29
      %p38 = scmp.eq.s32.totalorder %s21, 1
      %p39 = por %p37, %p38
      %p40 = scmp.ne.s32.totalorder %s29, %s30
      %p41 = scmp.eq.s32.totalorder %s21, 0
      %p42 = por %p40, %p41
      %p43 = scmp.ne.s32.totalorder %s29, %s30
      %p44 = scmp.eq.s32.totalorder %s22, 1
      %p45 = por %p43, %p44
      %p47 = scmp.ne.s32.totalorder %s30, %s46
      %p48 = scmp.eq.s32.totalorder %s22, 0
      %p49 = por %p47, %p48
      %s51 = sadd.s32 %s50, 1
      %p54 = scmp.eq.s32.totalorder %s16, 1
      %p55 = scmp.ne.s32.totalorder %s50, %s52
      %p56 = scmp.eq.s32.totalorder %s16, 0
      %p57 = por %p55, %p56
      %p58 = scmp.ne.s32.totalorder %s50, %s52
      %p59 = scmp.eq.s32.totalorder %s21, 1
      %p60 = por %p58, %p59
      %p61 = scmp.ne.s32.totalorder %s52, %s53
      %p62 = scmp.eq.s32.totalorder %s21, 0
      %p63 = por %p61, %p62
      %p64 = scmp.ne.s32.totalorder %s52, %s53
      %p65 = scmp.eq.s32.totalorder %s22, 1
      %p66 = por %p64, %p65
      %p68 = scmp.ne.s32.totalorder %s53, %s67
      %p69 = scmp.eq.s32.totalorder %s22, 0
      %p70 = por %p68, %p69
      %s72 = sadd.s32 %s71, 1
      %p75 = scmp.eq.s32.totalorder %s16, 1
      %p76 = scmp.ne.s32.totalorder %s71, %s73
      %p77 = scmp.eq.s32.totalorder %s16, 0
      %p78 = por %p76, %p77
      %p79 = scmp.ne.s32.totalorder %s71, %s73
      %p80 = scmp.eq.s32.totalorder %s21, 1
      %p81 = por %p79, %p80
      %p82 = scmp.ne.s32.totalorder %s73, %s74
      %p83 = scmp.eq.s32.totalorder %s21, 0
      %p84 = por %p82, %p83
      %p85 = scmp.ne.s32.totalorder %s73, %s74
      %p86 = scmp.eq.s32.totalorder %s22, 1
      %p87 = por %p85, %p86
      %p89 = scmp.ne.s32.totalorder %s74, %s88
      %p90 = scmp.eq.s32.totalorder %s22, 0
      %p91 = por %p89, %p90
      %s92 = ssub.s32 %s16, %s23
      %p93 = scmp.eq.s32.totalorder %s92, 0
      %s95 = sadd.s32 %s94, 1
      %s96 = scalar_select %p93, %s94, %s95
      %p99 = pneg %p93
      %p100 = scmp.eq.s32.totalorder %s16, 1
      %p101 = por %p99, %p100
      %p102 = scmp.ne.s32.totalorder %s94, %s97
      %p103 = scmp.eq.s32.totalorder %s16, 0
      %p104 = por %p102, %p103
      %p105 = scmp.ne.s32.totalorder %s94, %s97
      %p106 = scmp.eq.s32.totalorder %s21, 1
      %p107 = por %p105, %p106
      %p108 = scmp.ne.s32.totalorder %s97, %s98
      %p109 = scmp.eq.s32.totalorder %s21, 0
      %p110 = por %p108, %p109
      %p111 = scmp.ne.s32.totalorder %s97, %s98
      %p112 = scmp.eq.s32.totalorder %s22, 1
      %p113 = por %p111, %p112
      %p115 = scmp.ne.s32.totalorder %s98, %s114
      %p116 = scmp.eq.s32.totalorder %s22, 0
      %p117 = por %p115, %p116
      %p118 = scmp.le.s32.totalorder 1, %s16
      %p119 = scmp.lt.s32.totalorder %s16, 3
      %p120 = pnand %p118, %p119
      %p121 = pneg %p120
      // Predicated region
      $region9: #{tpu_custom_call.1} parent=5 // pred_check
        _
      $region10: #{tpu_custom_call.1} parent=5 // pred_check_branch
        %123 = sbr.rel (%p120) target = $region12
      $region11: #{tpu_custom_call.1} parent=5 // pred_region
        %s124 = ssub.s32 %s16, 1
        // Predicated region
        $region13: #{tpu_custom_call.1} parent=11 // pred_check
          %p125 = pneg %p63
        $region14: #{tpu_custom_call.1} parent=11 // pred_check_branch
          %127 = sbr.rel (%p125) target = $region16
        $region15: #{tpu_custom_call.1} parent=11 // pred_region
          %129 = vsyncadd [#allocation6], 0
          %s130 = sshll.u32 %s1, 4
          %s131 = int_to_ptr.hbm [resolvable:$true] %s130
          %s132 = sshll.u32 [#allocation5], 4
          %s133 = int_to_ptr.vmem [resolvable:$true] %s132
          %138 = dma.hbm_to_vmem [thread:$0]  %s131, 2560, %s133, [#allocation6], 128, 128, 8
        $region16: #{tpu_custom_call.1} parent=11 // pred_fallthru
          _
        // Predicated region
        $region17: #{tpu_custom_call.1} parent=11 // pred_check
          %p139 = pneg %p84
        $region18: #{tpu_custom_call.1} parent=11 // pred_check_branch
          %141 = sbr.rel (%p139) target = $region20
        $region19: #{tpu_custom_call.1} parent=11 // pred_region
          %143 = vsyncadd [#allocation6], 0
          %s145 = sshll.u32 %s2, 4
          %s146 = int_to_ptr.hbm [resolvable:$true] %s145
          %s147 = sshll.u32 [#allocation7], 4
          %s148 = int_to_ptr.vmem [resolvable:$true] %s147
          %150 = dma.hbm_to_vmem [thread:$0]  %s146, 128, %s148, [#allocation6]
        $region20: #{tpu_custom_call.1} parent=11 // pred_fallthru
          _
      $region12: #{tpu_custom_call.1} parent=5 // pred_fallthru
        _
      %p151 = scmp.lt.s32.totalorder %s16, 2
      // Predicated region
      $region21: #{tpu_custom_call.1} parent=5 // pred_check
        %p152 = pneg %p151
      $region22: #{tpu_custom_call.1} parent=5 // pred_check_branch
        %154 = sbr.rel (%p152) target = $region24
      $region23: #{tpu_custom_call.1} parent=5 // pred_region
        // Predicated region
        $region25: #{tpu_custom_call.1} parent=23 // pred_check
          %p155 = pneg %p36
        $region26: #{tpu_custom_call.1} parent=23 // pred_check_branch
          %157 = sbr.rel (%p155) target = $region28
        $region27: #{tpu_custom_call.1} parent=23 // pred_region
          %s158 = sand.u32 %s26, 1
          %s159 = scalar_lea.sflag [#allocation3], %s158
          %s160 = sand.u32 %s26, 1
          %s161 = smul.addr %s160, 8
          %s162 = scalar_lea.vmem [#allocation2], %s161
          %164 = vsyncadd %s159, 0
          %s165 = smul.addr %s16, 8
          %s166 = scalar_lea.hbm %s0, %s165
          %s168 = sshll.u32 %s166, 4
          %s169 = int_to_ptr.hbm [resolvable:$true] %s168
          %s170 = sshll.u32 %s162, 4
          %s171 = int_to_ptr.vmem [resolvable:$true] %s170
          %173 = dma.hbm_to_vmem [thread:$0]  %s169, 128, %s171, %s159
        $region28: #{tpu_custom_call.1} parent=23 // pred_fallthru
          _
      $region24: #{tpu_custom_call.1} parent=5 // pred_fallthru
        _
      %p174 = scmp.le.s32.totalorder 1, %s16
      %p175 = scmp.lt.s32.totalorder %s16, 3
      %p176 = pnand %p174, %p175
      %p177 = pneg %p176
      // Predicated region
      $region29: #{tpu_custom_call.1} parent=5 // pred_check
        _
      $region30: #{tpu_custom_call.1} parent=5 // pred_check_branch
        %179 = sbr.rel (%p176) target = $region32
      $region31: #{tpu_custom_call.1} parent=5 // pred_region
        %s180 = ssub.s32 %s16, 1
        %s181 = sand.u32 %s29, 1
        %s182 = scalar_lea.sflag [#allocation3], %s181
        %s183 = sand.u32 %s29, 1
        %s184 = smul.addr %s183, 8
        %s185 = scalar_lea.vmem [#allocation2], %s184
        // Predicated region
        $region33: #{tpu_custom_call.1} parent=31 // pred_check
          %p186 = pneg %p42
        $region34: #{tpu_custom_call.1} parent=31 // pred_check_branch
          %188 = sbr.rel (%p186) target = $region36
        $region35: #{tpu_custom_call.1} parent=31 // pred_region
          %190 = dma.done %s182, 128
        $region36: #{tpu_custom_call.1} parent=31 // pred_fallthru
          _
        // Predicated region
        $region37: #{tpu_custom_call.1} parent=31 // pred_check
          %p191 = pneg %p63
        $region38: #{tpu_custom_call.1} parent=31 // pred_check_branch
          %193 = sbr.rel (%p191) target = $region40
        $region39: #{tpu_custom_call.1} parent=31 // pred_region
          %195 = dma.done [#allocation6], 2560
        $region40: #{tpu_custom_call.1} parent=31 // pred_fallthru
          _
        // Predicated region
        $region41: #{tpu_custom_call.1} parent=31 // pred_check
          %p196 = pneg %p84
        $region42: #{tpu_custom_call.1} parent=31 // pred_check_branch
          %198 = sbr.rel (%p196) target = $region44
        $region43: #{tpu_custom_call.1} parent=31 // pred_region
          %200 = dma.done [#allocation6], 128
        $region44: #{tpu_custom_call.1} parent=31 // pred_fallthru
          _
        %s201 = sand.u32 %s29, 1
        %s202 = scalar_lea.sflag [#allocation3], %s201
        %s203 = sand.u32 %s29, 1
        %s204 = smul.addr %s203, 8
        %s205 = scalar_lea.vmem [#allocation2], %s204
        %p206 = pneg %p42
        %p207 = pneg %p39
        %p208 = pneg %p63
        %p209 = pneg %p60
        %p210 = pneg %p84
        %p211 = pneg %p81
        %p212 = pneg %p110
        %p213 = pneg %p107
        %s214 = sand.u32 %s97, 1
        %s215 = scalar_lea.sflag [#allocation4], %s214
        %s216 = sand.u32 %s97, 1
        %s217 = smul.addr %s216, 8
        %s218 = scalar_lea.vmem [#allocation8], %s217
        %v219 = vld [vmem:[%s185] sm:$0xff]
        %v220 = vld [vmem:[#allocation5] sm:$0xff]
        %v221 = vld [vmem:[#allocation5 + $0x8] sm:$0xff]
        %v222 = vld [vmem:[#allocation5 + $0x10] sm:$0xff]
        %v223 = vld [vmem:[#allocation5 + $0x18] sm:$0xff]
        %v224 = vld [vmem:[#allocation5 + $0x20] sm:$0xff]
        %v225 = vld [vmem:[#allocation5 + $0x28] sm:$0xff]
        %v226 = vld [vmem:[#allocation5 + $0x30] sm:$0xff]
        %v227 = vld [vmem:[#allocation5 + $0x38] sm:$0xff]
        %v228 = vld [vmem:[#allocation5 + $0x40] sm:$0xff]
        %v229 = vld [vmem:[#allocation5 + $0x48] sm:$0xff]
        %v230 = vld [vmem:[#allocation5 + $0x50] sm:$0xff]
        %v231 = vld [vmem:[#allocation5 + $0x58] sm:$0xff]
        %v232 = vld [vmem:[#allocation5 + $0x60] sm:$0xff]
        %v233 = vld [vmem:[#allocation5 + $0x68] sm:$0xff]
        %v234 = vld [vmem:[#allocation5 + $0x70] sm:$0xff]
        %v235 = vld [vmem:[#allocation5 + $0x78] sm:$0xff]
        %v236 = vld [vmem:[#allocation5 + $0x80] sm:$0xff]
        %v237 = vld [vmem:[#allocation5 + $0x88] sm:$0xff]
        %v238 = vld [vmem:[#allocation5 + $0x90] sm:$0xff]
        %v239 = vld [vmem:[#allocation5 + $0x98] sm:$0xff]
        %v240 = vld [vmem:[#allocation7] sm:$0xff]
        %v241 = vperm.slane %v240, 0
        %vm242 = vcmask 261120
        %v244 = vsel %vm242, %v219, 0
        %246 = vmatpush.msra.mxu0 0.0
        %247 = vmatpush.msra.mxu0 0.0
        %248 = vmatpush.msra.mxu0 0.0
        %249 = vmatpush.msra.mxu0 0.0
        %250 = vmatpush.msra.mxu0 0.0
        %251 = vmatpush.msra.mxu0 0.0
        %252 = vmatpush.msra.mxu0 0.0
        %253 = vmatpush.msra.mxu0 0.0
        %254 = vmatpush.msra.mxu0 0.0
        %255 = vmatpush.msra.mxu0 0.0
        %256 = vmatpush.msra.mxu0 0.0
        %257 = vmatpush.msra.mxu0 0.0
        %258 = vmatpush.msra.mxu0 %v223
        %259 = vmatpush.msra.mxu0 %v222
        %260 = vmatpush.msra.mxu0 %v221
        %261 = vmatpush.msra.mxu0 %v220
        %262 = vmatmul.f32.gmra.mxu0 %v244
        %v263 = vpop.f32.mrf.mxu0
        %v264 = vadd.f32 %v241, %v263
        %265 = vdwg.mxu0
        %267 = vrot.lane.b32.xlu0 %v264, 96
        %v268 = vpop.permute.xlu0 %267
        %vm269 = vcmask 64512
        %v270 = vsel %vm269, %v264, 0
        %v272 = vsel %vm269, %v268, 0
        %274 = vmatpush.xpose.msra.mxu0 0.0
        %275 = vmatpush.xpose.msra.mxu0 0.0
        %276 = vmatpush.xpose.msra.mxu0 0.0
        %277 = vmatpush.xpose.msra.mxu0 0.0
        %278 = vmatpush.xpose.msra.mxu0 0.0
        %279 = vmatpush.xpose.msra.mxu0 0.0
        %280 = vmatpush.xpose.msra.mxu0 0.0
        %281 = vmatpush.xpose.msra.mxu0 0.0
        %282 = vmatpush.xpose.msra.mxu0 0.0
        %283 = vmatpush.xpose.msra.mxu0 0.0
        %284 = vmatpush.xpose.msra.mxu0 0.0
        %285 = vmatpush.xpose.msra.mxu0 0.0
        %286 = vmatpush.xpose.msra.mxu0 0.0
        %287 = vmatpush.xpose.msra.mxu0 0.0
        %288 = vmatpush.xpose.msra.mxu0 0.0
        %289 = vmatpush.xpose.msra.mxu0 %v272
        %290 = vmatmul.f32.gmra.mxu0 %v270
        %v291 = vpop.f32.mrf.mxu0
        %v292 = vadd.f32 0.0, %v291
        %293 = vdwg.mxu0
        %v294 = vsel %vm269, %v292, -inf
        %295 = vmax.xlane.f32.xlu0 %v294
        %v296 = vpop.xlane.xlu0 %295
        %v297 = vsub.f32 %v292, %v296
        %v298 = vmul.f32 %v297, 1.442695
        %v299 = vpow.pop %v298
        %v300 = vsel %vm269, %v299, 0.0
        %301 = vadd.xlane.f32.xlu0 %v300
        %v302 = vpop.xlane.xlu0 %301
        %v303 = vrcp.pop %v302
        %v304 = vmul.f32 %v302, %v303
        %v305 = vsub.f32 1.0, %v304
        %v306 = vmul.f32 %v303, %v305
        %v307 = vadd.f32 %v303, %v306
        %vm308 = vweird.f32 %v302
        %vm309 = vweird.f32 %v303
        %vm310 = vmor %vm308, %vm309
        %v311 = vsel %vm310, %v303, %v307
        %v312 = vand.u32 2147483647, %v302
        %vm313 = vcmp.eq.f32.partialorder %v312, 8.507059e+37
        %v314 = vand.u32 %v302, 2147483648
        %v315 = vor.u32 1.1754944e-38, %v314
        %v316 = vsel %vm313, %v315, %v311
        %v317 = vmul.f32 %v299, %v316
        %318 = vrot.lane.b32.xlu0 %v264, 64
        %v319 = vpop.permute.xlu0 %318
        %v322 = vsel %vm269, %v317, 0
        %324 = vmatpush.msra.mxu0 0.0
        %325 = vmatpush.msra.mxu0 0.0
        %326 = vmatpush.msra.mxu0 0.0
        %327 = vmatpush.msra.mxu0 0.0
        %328 = vmatpush.msra.mxu0 0.0
        %329 = vmatpush.msra.mxu0 0.0
        %330 = vmatpush.msra.mxu0 0.0
        %331 = vmatpush.msra.mxu0 0.0
        %332 = vmatpush.msra.mxu0 0.0
        %333 = vmatpush.msra.mxu0 0.0
        %334 = vmatpush.msra.mxu0 0.0
        %335 = vmatpush.msra.mxu0 0.0
        %336 = vmatpush.msra.mxu0 0.0
        %337 = vmatpush.msra.mxu0 0.0
        %338 = vmatpush.msra.mxu0 0.0
        %339 = vmatpush.msra.mxu0 %v319
        %340 = vmatmul.f32.gmra.mxu0 %v322
        %v341 = vpop.f32.mrf.mxu0
        %v342 = vadd.f32 0.0, %v341
        %343 = vdwg.mxu0
        %344 = vrot.lane.b32.xlu0 %v264, 120
        %v345 = vpop.permute.xlu0 %344
        %346 = vrot.lane.b32.xlu0 %v264, 88
        %v347 = vpop.permute.xlu0 %346
        %v348 = vsel %vm269, %v345, 0
        %v350 = vsel %vm269, %v347, 0
        %352 = vmatpush.xpose.msra.mxu0 0.0
        %353 = vmatpush.xpose.msra.mxu0 0.0
        %354 = vmatpush.xpose.msra.mxu0 0.0
        %355 = vmatpush.xpose.msra.mxu0 0.0
        %356 = vmatpush.xpose.msra.mxu0 0.0
        %357 = vmatpush.xpose.msra.mxu0 0.0
        %358 = vmatpush.xpose.msra.mxu0 0.0
        %359 = vmatpush.xpose.msra.mxu0 0.0
        %360 = vmatpush.xpose.msra.mxu0 0.0
        %361 = vmatpush.xpose.msra.mxu0 0.0
        %362 = vmatpush.xpose.msra.mxu0 0.0
        %363 = vmatpush.xpose.msra.mxu0 0.0
        %364 = vmatpush.xpose.msra.mxu0 0.0
        %365 = vmatpush.xpose.msra.mxu0 0.0
        %366 = vmatpush.xpose.msra.mxu0 0.0
        %367 = vmatpush.xpose.msra.mxu0 %v350
        %368 = vmatmul.f32.gmra.mxu0 %v348
        %v369 = vpop.f32.mrf.mxu0
        %v370 = vadd.f32 0.0, %v369
        %371 = vdwg.mxu0
        %v372 = vsel %vm269, %v370, -inf
        %373 = vmax.xlane.f32.xlu0 %v372
        %v374 = vpop.xlane.xlu0 %373
        %v375 = vsub.f32 %v370, %v374
        %v376 = vmul.f32 %v375, 1.442695
        %v377 = vpow.pop %v376
        %v378 = vsel %vm269, %v377, 0.0
        %379 = vadd.xlane.f32.xlu0 %v378
        %v380 = vpop.xlane.xlu0 %379
        %v381 = vrcp.pop %v380
        %v382 = vmul.f32 %v380, %v381
        %v383 = vsub.f32 1.0, %v382
        %v384 = vmul.f32 %v381, %v383
        %v385 = vadd.f32 %v381, %v384
        %vm386 = vweird.f32 %v380
        %vm387 = vweird.f32 %v381
        %vm388 = vmor %vm386, %vm387
        %v389 = vsel %vm388, %v381, %v385
        %v390 = vand.u32 2147483647, %v380
        %vm391 = vcmp.eq.f32.partialorder %v390, 8.507059e+37
        %v392 = vand.u32 %v380, 2147483648
        %v393 = vor.u32 1.1754944e-38, %v392
        %v394 = vsel %vm391, %v393, %v389
        %v395 = vmul.f32 %v377, %v394
        %396 = vrot.lane.b32.xlu0 %v264, 56
        %v397 = vpop.permute.xlu0 %396
        %v400 = vsel %vm269, %v395, 0
        %402 = vmatpush.msra.mxu0 0.0
        %403 = vmatpush.msra.mxu0 0.0
        %404 = vmatpush.msra.mxu0 0.0
        %405 = vmatpush.msra.mxu0 0.0
        %406 = vmatpush.msra.mxu0 0.0
        %407 = vmatpush.msra.mxu0 0.0
        %408 = vmatpush.msra.mxu0 0.0
        %409 = vmatpush.msra.mxu0 0.0
        %410 = vmatpush.msra.mxu0 0.0
        %411 = vmatpush.msra.mxu0 0.0
        %412 = vmatpush.msra.mxu0 0.0
        %413 = vmatpush.msra.mxu0 0.0
        %414 = vmatpush.msra.mxu0 0.0
        %415 = vmatpush.msra.mxu0 0.0
        %416 = vmatpush.msra.mxu0 0.0
        %417 = vmatpush.msra.mxu0 %v397
        %418 = vmatmul.f32.gmra.mxu0 %v400
        %v419 = vpop.f32.mrf.mxu0
        %v420 = vadd.f32 0.0, %v419
        %421 = vdwg.mxu0
        %422 = vrot.lane.b32.xlu0 %v264, 112
        %v423 = vpop.permute.xlu0 %422
        %424 = vrot.lane.b32.xlu0 %v264, 80
        %v425 = vpop.permute.xlu0 %424
        %v426 = vsel %vm269, %v423, 0
        %v428 = vsel %vm269, %v425, 0
        %430 = vmatpush.xpose.msra.mxu0 0.0
        %431 = vmatpush.xpose.msra.mxu0 0.0
        %432 = vmatpush.xpose.msra.mxu0 0.0
        %433 = vmatpush.xpose.msra.mxu0 0.0
        %434 = vmatpush.xpose.msra.mxu0 0.0
        %435 = vmatpush.xpose.msra.mxu0 0.0
        %436 = vmatpush.xpose.msra.mxu0 0.0
        %437 = vmatpush.xpose.msra.mxu0 0.0
        %438 = vmatpush.xpose.msra.mxu0 0.0
        %439 = vmatpush.xpose.msra.mxu0 0.0
        %440 = vmatpush.xpose.msra.mxu0 0.0
        %441 = vmatpush.xpose.msra.mxu0 0.0
        %442 = vmatpush.xpose.msra.mxu0 0.0
        %443 = vmatpush.xpose.msra.mxu0 0.0
        %444 = vmatpush.xpose.msra.mxu0 0.0
        %445 = vmatpush.xpose.msra.mxu0 %v428
        %446 = vmatmul.f32.gmra.mxu0 %v426
        %v447 = vpop.f32.mrf.mxu0
        %v448 = vadd.f32 0.0, %v447
        %449 = vdwg.mxu0
        %v450 = vsel %vm269, %v448, -inf
        %451 = vmax.xlane.f32.xlu0 %v450
        %v452 = vpop.xlane.xlu0 %451
        %v453 = vsub.f32 %v448, %v452
        %v454 = vmul.f32 %v453, 1.442695
        %v455 = vpow.pop %v454
        %v456 = vsel %vm269, %v455, 0.0
        %457 = vadd.xlane.f32.xlu0 %v456
        %v458 = vpop.xlane.xlu0 %457
        %v459 = vrcp.pop %v458
        %v460 = vmul.f32 %v458, %v459
        %v461 = vsub.f32 1.0, %v460
        %v462 = vmul.f32 %v459, %v461
        %v463 = vadd.f32 %v459, %v462
        %vm464 = vweird.f32 %v458
        %vm465 = vweird.f32 %v459
        %vm466 = vmor %vm464, %vm465
        %v467 = vsel %vm466, %v459, %v463
        %v468 = vand.u32 2147483647, %v458
        %vm469 = vcmp.eq.f32.partialorder %v468, 8.507059e+37
        %v470 = vand.u32 %v458, 2147483648
        %v471 = vor.u32 1.1754944e-38, %v470
        %v472 = vsel %vm469, %v471, %v467
        %v473 = vmul.f32 %v455, %v472
        %474 = vrot.lane.b32.xlu0 %v264, 48
        %v475 = vpop.permute.xlu0 %474
        %v478 = vsel %vm269, %v473, 0
        %480 = vmatpush.msra.mxu0 0.0
        %481 = vmatpush.msra.mxu0 0.0
        %482 = vmatpush.msra.mxu0 0.0
        %483 = vmatpush.msra.mxu0 0.0
        %484 = vmatpush.msra.mxu0 0.0
        %485 = vmatpush.msra.mxu0 0.0
        %486 = vmatpush.msra.mxu0 0.0
        %487 = vmatpush.msra.mxu0 0.0
        %488 = vmatpush.msra.mxu0 0.0
        %489 = vmatpush.msra.mxu0 0.0
        %490 = vmatpush.msra.mxu0 0.0
        %491 = vmatpush.msra.mxu0 0.0
        %492 = vmatpush.msra.mxu0 0.0
        %493 = vmatpush.msra.mxu0 0.0
        %494 = vmatpush.msra.mxu0 0.0
        %495 = vmatpush.msra.mxu0 %v475
        %496 = vmatmul.f32.gmra.mxu0 %v478
        %v497 = vpop.f32.mrf.mxu0
        %v498 = vadd.f32 0.0, %v497
        %499 = vdwg.mxu0
        %500 = vrot.lane.b32.xlu0 %v264, 104
        %v501 = vpop.permute.xlu0 %500
        %502 = vrot.lane.b32.xlu0 %v264, 72
        %v503 = vpop.permute.xlu0 %502
        %v504 = vsel %vm269, %v501, 0
        %v506 = vsel %vm269, %v503, 0
        %508 = vmatpush.xpose.msra.mxu0 0.0
        %509 = vmatpush.xpose.msra.mxu0 0.0
        %510 = vmatpush.xpose.msra.mxu0 0.0
        %511 = vmatpush.xpose.msra.mxu0 0.0
        %512 = vmatpush.xpose.msra.mxu0 0.0
        %513 = vmatpush.xpose.msra.mxu0 0.0
        %514 = vmatpush.xpose.msra.mxu0 0.0
        %515 = vmatpush.xpose.msra.mxu0 0.0
        %516 = vmatpush.xpose.msra.mxu0 0.0
        %517 = vmatpush.xpose.msra.mxu0 0.0
        %518 = vmatpush.xpose.msra.mxu0 0.0
        %519 = vmatpush.xpose.msra.mxu0 0.0
        %520 = vmatpush.xpose.msra.mxu0 0.0
        %521 = vmatpush.xpose.msra.mxu0 0.0
        %522 = vmatpush.xpose.msra.mxu0 0.0
        %523 = vmatpush.xpose.msra.mxu0 %v506
        %524 = vmatmul.f32.gmra.mxu0 %v504
        %v525 = vpop.f32.mrf.mxu0
        %v526 = vadd.f32 0.0, %v525
        %527 = vdwg.mxu0
        %v528 = vsel %vm269, %v526, -inf
        %529 = vmax.xlane.f32.xlu0 %v528
        %v530 = vpop.xlane.xlu0 %529
        %v531 = vsub.f32 %v526, %v530
        %v532 = vmul.f32 %v531, 1.442695
        %v533 = vpow.pop %v532
        %v534 = vsel %vm269, %v533, 0.0
        %535 = vadd.xlane.f32.xlu0 %v534
        %v536 = vpop.xlane.xlu0 %535
        %v537 = vrcp.pop %v536
        %v538 = vmul.f32 %v536, %v537
        %v539 = vsub.f32 1.0, %v538
        %v540 = vmul.f32 %v537, %v539
        %v541 = vadd.f32 %v537, %v540
        %vm542 = vweird.f32 %v536
        %vm543 = vweird.f32 %v537
        %vm544 = vmor %vm542, %vm543
        %v545 = vsel %vm544, %v537, %v541
        %v546 = vand.u32 2147483647, %v536
        %vm547 = vcmp.eq.f32.partialorder %v546, 8.507059e+37
        %v548 = vand.u32 %v536, 2147483648
        %v549 = vor.u32 1.1754944e-38, %v548
        %v550 = vsel %vm547, %v549, %v545
        %v551 = vmul.f32 %v533, %v550
        %552 = vrot.lane.b32.xlu0 %v264, 40
        %v553 = vpop.permute.xlu0 %552
        %v556 = vsel %vm269, %v551, 0
        %558 = vmatpush.msra.mxu0 0.0
        %559 = vmatpush.msra.mxu0 0.0
        %560 = vmatpush.msra.mxu0 0.0
        %561 = vmatpush.msra.mxu0 0.0
        %562 = vmatpush.msra.mxu0 0.0
        %563 = vmatpush.msra.mxu0 0.0
        %564 = vmatpush.msra.mxu0 0.0
        %565 = vmatpush.msra.mxu0 0.0
        %566 = vmatpush.msra.mxu0 0.0
        %567 = vmatpush.msra.mxu0 0.0
        %568 = vmatpush.msra.mxu0 0.0
        %569 = vmatpush.msra.mxu0 0.0
        %570 = vmatpush.msra.mxu0 0.0
        %571 = vmatpush.msra.mxu0 0.0
        %572 = vmatpush.msra.mxu0 0.0
        %573 = vmatpush.msra.mxu0 %v553
        %574 = vmatmul.f32.gmra.mxu0 %v556
        %v575 = vpop.f32.mrf.mxu0
        %v576 = vadd.f32 0.0, %v575
        %577 = vdwg.mxu0
        %579 = vrot.lane.b32.xlu0 %v420, 8
        %v580 = vpop.permute.xlu0 %579
        %583 = vrot.lane.b32.xlu0 %v498, 16
        %v584 = vpop.permute.xlu0 %583
        %587 = vrot.lane.b32.xlu0 %v576, 24
        %v588 = vpop.permute.xlu0 %587
        %v590 = vsel %vm269, %v342, %v580
        %vm591 = vcmask 130048
        %v592 = vsel %vm591, %v590, %v584
        %vm593 = vcmask 195584
        %v594 = vsel %vm593, %v592, %v588
        %v595 = vperm.slane %v240, 1
        %v597 = vsel %vm242, %v594, 0
        %599 = vmatpush.msra.mxu0 0.0
        %600 = vmatpush.msra.mxu0 0.0
        %601 = vmatpush.msra.mxu0 0.0
        %602 = vmatpush.msra.mxu0 0.0
        %603 = vmatpush.msra.mxu0 0.0
        %604 = vmatpush.msra.mxu0 0.0
        %605 = vmatpush.msra.mxu0 0.0
        %606 = vmatpush.msra.mxu0 0.0
        %607 = vmatpush.msra.mxu0 0.0
        %608 = vmatpush.msra.mxu0 0.0
        %609 = vmatpush.msra.mxu0 0.0
        %610 = vmatpush.msra.mxu0 0.0
        %611 = vmatpush.msra.mxu0 %v227
        %612 = vmatpush.msra.mxu0 %v226
        %613 = vmatpush.msra.mxu0 %v225
        %614 = vmatpush.msra.mxu0 %v224
        %615 = vmatmul.f32.gmra.mxu0 %v597
        %v616 = vpop.f32.mrf.mxu0
        %v617 = vadd.f32 %v595, %v616
        %618 = vdwg.mxu0
        %v619 = vadd.f32 %v219, %v617
        %v620 = vsel %vm242, %v619, 0.0
        %621 = vadd.xlane.f32.xlu0 %v620
        %v622 = vpop.xlane.xlu0 %621
        %v623 = vrcp.pop 32.0
        %v624 = vmul.f32 32.0, %v623
        %v625 = vsub.f32 1.0, %v624
        %v626 = vmul.f32 %v623, %v625
        %v627 = vadd.f32 %v623, %v626
        %vm628 = vweird.f32 %v623
        %v629 = vsel %vm628, %v623, %v627
        %v630 = vmul.f32 %v622, %v629
        %v631 = vsub.f32 %v619, %v630
        %v632 = vmul.f32 %v631, %v631
        %v633 = vsel %vm242, %v632, 0.0
        %634 = vadd.xlane.f32.xlu0 %v633
        %v635 = vpop.xlane.xlu0 %634
        %v636 = vmul.f32 %v635, %v629
        %v637 = vadd.f32 %v636, 1e-05
        %v638 = vrsqrt.pop %v637
        %v639 = vmul.f32 %v638, %v637
        %v640 = vmul.f32 %v639, %v638
        %v641 = vmul.f32 0.5, %v640
        %v642 = vsub.f32 1.5, %v641
        %v643 = vmul.f32 %v638, %v642
        %vm644 = vweird.f32 %v637
        %vm645 = vweird.f32 %v638
        %vm646 = vmor %vm644, %vm645
        %v647 = vsel %vm646, %v638, %v643
        %v648 = vmul.f32 %v631, %v647
        %v649 = vperm.slane %v240, 4
        %v650 = vmul.f32 %v648, %v649
        %v651 = vperm.slane %v240, 5
        %v652 = vadd.f32 %v650, %v651
        %v653 = vperm.slane %v240, 2
        %v655 = vsel %vm242, %v652, 0
        %657 = vmatpush.msra.mxu0 0.0
        %658 = vmatpush.msra.mxu0 0.0
        %659 = vmatpush.msra.mxu0 0.0
        %660 = vmatpush.msra.mxu0 0.0
        %661 = vmatpush.msra.mxu0 0.0
        %662 = vmatpush.msra.mxu0 0.0
        %663 = vmatpush.msra.mxu0 0.0
        %664 = vmatpush.msra.mxu0 0.0
        %665 = vmatpush.msra.mxu0 0.0
        %666 = vmatpush.msra.mxu0 0.0
        %667 = vmatpush.msra.mxu0 0.0
        %668 = vmatpush.msra.mxu0 0.0
        %669 = vmatpush.msra.mxu0 %v231
        %670 = vmatpush.msra.mxu0 %v230
        %671 = vmatpush.msra.mxu0 %v229
        %672 = vmatpush.msra.mxu0 %v228
        %673 = vmatmul.f32.gmra.mxu0 %v655
        %v674 = vpop.f32.mrf.mxu0
        %v675 = vadd.f32 %v653, %v674
        %676 = vdwg.mxu0
        %v677 = vmax.f32 %v675, 0.0
        %v678 = vperm.slane %v240, 3
        %vm679 = vcmask 523264
        %v681 = vsel %vm679, %v677, 0
        %683 = vmatpush.msra.mxu0 0.0
        %684 = vmatpush.msra.mxu0 0.0
        %685 = vmatpush.msra.mxu0 0.0
        %686 = vmatpush.msra.mxu0 0.0
        %687 = vmatpush.msra.mxu0 0.0
        %688 = vmatpush.msra.mxu0 0.0
        %689 = vmatpush.msra.mxu0 0.0
        %690 = vmatpush.msra.mxu0 0.0
        %691 = vmatpush.msra.mxu0 %v239
        %692 = vmatpush.msra.mxu0 %v238
        %693 = vmatpush.msra.mxu0 %v237
        %694 = vmatpush.msra.mxu0 %v236
        %695 = vmatpush.msra.mxu0 %v235
        %696 = vmatpush.msra.mxu0 %v234
        %697 = vmatpush.msra.mxu0 %v233
        %698 = vmatpush.msra.mxu0 %v232
        %699 = vmatmul.f32.gmra.mxu0 %v681
        %v700 = vpop.f32.mrf.mxu0
        %v701 = vadd.f32 %v678, %v700
        %702 = vdwg.mxu0
        %v703 = vadd.f32 %v652, %v701
        %v704 = vsel %vm242, %v703, 0.0
        %705 = vadd.xlane.f32.xlu0 %v704
        %v706 = vpop.xlane.xlu0 %705
        %v707 = vmul.f32 %v706, %v629
        %v708 = vsub.f32 %v703, %v707
        %v709 = vmul.f32 %v708, %v708
        %v710 = vsel %vm242, %v709, 0.0
        %711 = vadd.xlane.f32.xlu0 %v710
        %v712 = vpop.xlane.xlu0 %711
        %v713 = vmul.f32 %v712, %v629
        %v714 = vadd.f32 %v713, 1e-05
        %v715 = vrsqrt.pop %v714
        %v716 = vmul.f32 %v715, %v714
        %v717 = vmul.f32 %v716, %v715
        %v718 = vmul.f32 0.5, %v717
        %v719 = vsub.f32 1.5, %v718
        %v720 = vmul.f32 %v715, %v719
        %vm721 = vweird.f32 %v714
        %vm722 = vweird.f32 %v715
        %vm723 = vmor %vm721, %vm722
        %v724 = vsel %vm723, %v715, %v720
        %v725 = vmul.f32 %v708, %v724
        %v726 = vperm.slane %v240, 6
        %v727 = vmul.f32 %v725, %v726
        %v728 = vperm.slane %v240, 7
        %v729 = vadd.f32 %v727, %v728
        %730 = vst.msk [vmem:[%s218] sm:$0xff] %vm242, %v729
        %s731 = sand.u32 %s97, 1
        %s732 = scalar_lea.sflag [#allocation4], %s731
        %s733 = sand.u32 %s97, 1
        %s734 = smul.addr %s733, 8
        %s735 = scalar_lea.vmem [#allocation8], %s734
        // Predicated region
        $region45: #{tpu_custom_call.1} parent=31 // pred_check
          %p736 = pneg %p107
        $region46: #{tpu_custom_call.1} parent=31 // pred_check_branch
          %738 = sbr.rel (%p736) target = $region48
        $region47: #{tpu_custom_call.1} parent=31 // pred_region
          %740 = vsyncadd %s732, 0
          %s741 = smul.addr %s21, 8
          %s742 = scalar_lea.hbm %s3, %s741
          %s744 = sshll.u32 %s735, 4
          %s745 = int_to_ptr.vmem [resolvable:$true] %s744
          %s746 = sshll.u32 %s742, 4
          %s747 = int_to_ptr.hbm [resolvable:$true] %s746
          %749 = dma.vmem_to_hbm [thread:$0]  %s745, 128, %s747, %s732
        $region48: #{tpu_custom_call.1} parent=31 // pred_fallthru
          _
      $region32: #{tpu_custom_call.1} parent=5 // pred_fallthru
        _
      %p750 = scmp.le.s32.totalorder 2, %s16
      // Predicated region
      $region49: #{tpu_custom_call.1} parent=5 // pred_check
        %p751 = pneg %p750
      $region50: #{tpu_custom_call.1} parent=5 // pred_check_branch
        %753 = sbr.rel (%p751) target = $region52
      $region51: #{tpu_custom_call.1} parent=5 // pred_region
        %s754 = ssub.s32 %s16, 2
        // Predicated region
        $region53: #{tpu_custom_call.1} parent=51 // pred_check
          %p755 = pneg %p113
        $region54: #{tpu_custom_call.1} parent=51 // pred_check_branch
          %757 = sbr.rel (%p755) target = $region56
        $region55: #{tpu_custom_call.1} parent=51 // pred_region
          %s758 = sand.u32 %s98, 1
          %s759 = scalar_lea.sflag [#allocation4], %s758
          %s760 = sand.u32 %s98, 1
          %s761 = smul.addr %s760, 8
          %s762 = scalar_lea.vmem [#allocation8], %s761
          %764 = dma.done %s759, 128
        $region56: #{tpu_custom_call.1} parent=51 // pred_fallthru
          _
      $region52: #{tpu_custom_call.1} parent=5 // pred_fallthru
        _
    $region6: #{tpu_custom_call.1} parent=1 // loop_footer
      %s20 = sadd.s32 1, %s16
    $region7: #{tpu_custom_call.1} parent=1 // loop_footer_branch
      %15 = sbr.rel target = $region3
    $region8: #{tpu_custom_call.1} parent=1 // loop_exit
      _
    %765 = vsyncpa [#allocation3], 1
    %s766 = scalar_lea.sflag [#allocation3], 1
    %767 = vsyncpa %s766, 1
    %768 = vsyncpa [#allocation6], 1
    %769 = vsyncpa [#allocation4], 1
    %s770 = scalar_lea.sflag [#allocation4], 1
    %771 = vsyncpa %s770, 1

</llo_original>
